<compile_context>
chip_gen: v5e
topology: v5e:2x2
jax: 0.10.0
libtpu: 0.0.40
codegen_flags: <defaults>
</compile_context>

<pallas_src>
import jax
import jax.numpy as jnp
from jax.experimental import pallas as pl
from jax.experimental.pallas import tpu as pltpu


def _copy_kernel(x_ref, o_ref):
    # Both blocks address the same (row, column) window of the kept region,
    # so the body is a plain full-tile copy.  The single partial boundary
    # block (if any) is padded on load / masked on store by Pallas.
    o_ref[...] = x_ref[...]


def _round_up(x, m):
    return -(-x // m) * m


def _choose_tiles(rows, l_out, itemsize, sublane, tile_bytes, min_steps=8):
    """Pick (tile_r, tile_c) for the 2-D copy grid.

    tile_c: multiple of 128, at most round_up(l_out, 128), small enough that a
            sublane-high block fits `tile_bytes` (column-tiling fallback for
            skinny-rows / long-L inputs that would otherwise blow VMEM).
    tile_r: multiple of `sublane`, block bytes <= tile_bytes, sized so the
            total grid has >= `min_steps` steps when the problem allows
            (software pipelining + both v7x TensorCores busy), preferring an
            even total step count.
    """
    lc_full = _round_up(l_out, 128)
    max_tc = max(128, (tile_bytes // (sublane * itemsize)) // 128 * 128)
    tile_c = min(lc_full, max_tc)
    col_steps = pl.cdiv(l_out, tile_c)

    max_tr = max(sublane, (tile_bytes // (tile_c * itemsize)) // sublane * sublane)
    target_row_steps = max(1, -(-min_steps // col_steps))
    tr_for_steps = max(sublane, (rows // target_row_steps) // sublane * sublane)
    tile_r = min(max_tr, tr_for_steps, _round_up(rows, sublane))

    # Best-effort: make the total step count even (v7x: 2 TCs share the
    # parallel grid; an odd count strands one core with extra work).
    row_steps = pl.cdiv(rows, tile_r)
    if (row_steps * col_steps) % 2 == 1 and rows > tile_r:
        tr_try = max(sublane, _round_up(-(-rows // (row_steps + 1)), sublane))
        if tr_try < tile_r and (pl.cdiv(rows, tr_try) * col_steps) % 2 == 0:
            tile_r = tr_try

    return tile_r, tile_c


def chomp1d(x: jax.Array, chomp_size: int, *,
            min_bytes_for_kernel: int = 1 << 20,
            tile_bytes: int = 2 << 20) -> jax.Array:
    """x: (N, C, L) -> (N, C, L - chomp_size), equal to x[:, :, :-chomp_size]."""
    n, c, l = x.shape
    if chomp_size == 0:
        # Intent of Chomp1d(0) in a TCN is "trim nothing".
        return x
    assert 0 < chomp_size < l, "chomp_size must be in [0, L)"
    l_out = l - chomp_size

    itemsize = jnp.dtype(x.dtype).itemsize

    # Tiny problems (pallas_call overhead > copy cost) or dtypes without a
    # tuned sublane packing: a plain XLA slice is strictly cheaper / safer.
    if x.size * itemsize < min_bytes_for_kernel or itemsize not in (1, 2, 4):
        return x[:, :, :l_out]

    # Sublane packing multiple per dtype width (f32:8, bf16:16, int8/fp8:32).
    sublane = {4: 8, 2: 16, 1: 32}[itemsize]

    rows = n * c
    x2 = x.reshape(rows, l)

    tile_r, tile_c = _choose_tiles(rows, l_out, itemsize, sublane, tile_bytes)
    grid = (pl.cdiv(rows, tile_r), pl.cdiv(l_out, tile_c))

    # Double-buffered in + out blocks, with headroom; well under the scoped
    # default on v5e/v6e and the 64 MiB physical VMEM on v7x.
    block_bytes = tile_r * tile_c * itemsize
    vmem_limit = int(min(64 << 20, max(8 << 20, 6 * block_bytes)))

    out2 = pl.pallas_call(
        _copy_kernel,
        out_shape=jax.ShapeDtypeStruct((rows, l_out), x.dtype),
        grid_spec=pltpu.PrefetchScalarGridSpec(
            num_scalar_prefetch=0,
            grid=grid,
            # Column blocks never start inside the chomped tail; at most the
            # single boundary block reads (< tile_c) tail columns.
            in_specs=[pl.BlockSpec((tile_r, tile_c), lambda i, j: (i, j))],
            out_specs=pl.BlockSpec((tile_r, tile_c), lambda i, j: (i, j)),
        ),
        compiler_params=pltpu.CompilerParams(
            dimension_semantics=("parallel", "parallel"),
            vmem_limit_bytes=vmem_limit,
        ),
        cost_estimate=pl.CostEstimate(
            flops=0,
            transcendentals=0,
            bytes_accessed=2 * rows * l_out * itemsize,
        ),
    )(x2)

    return out2.reshape(n, c, l_out)


if __name__ == "__main__":
    key = jax.random.PRNGKey(0)

    # 1) TCN-like toy shape, forced through the Pallas path
    #    (l_out = 14 is not lane-aligned -> masked boundary block).
    N, C, L, chomp = 2, 4, 16, 2
    x = jax.random.normal(key, (N, C, L), dtype=jnp.float32)
    out = jax.block_until_ready(chomp1d(x, chomp, min_bytes_for_kernel=0))
    ref = x[:, :, :-chomp]
    assert out.shape == (N, C, L - chomp), out.shape
    assert out.dtype == x.dtype
    assert jnp.array_equal(out, ref), "mismatch (small unaligned path)"

    # 2) Lane-aligned kept window (l_out = 128): the chomped tail is never
    #    read from HBM; pure full-tile copies over an even row grid.
    N2, C2, L2, chomp2 = 2, 8, 256, 128
    x2 = jax.random.normal(jax.random.PRNGKey(0), (N2, C2, L2), dtype=jnp.float32)
    out2 = jax.block_until_ready(chomp1d(x2, chomp2, min_bytes_for_kernel=0))
    assert out2.shape == (N2, C2, L2 - chomp2)
    assert jnp.array_equal(out2, x2[:, :, :-chomp2]), "mismatch (aligned path)"

    # 3) Column-tiling fallback (skinny rows / long L): a small tile budget
    #    forces a 2-D (rows x 128-col) grid with a masked boundary column block.
    N3, C3, L3, chomp3 = 2, 8, 1024, 100
    x3 = jax.random.normal(jax.random.PRNGKey(0), (N3, C3, L3), dtype=jnp.float32)
    out3 = jax.block_until_ready(
        chomp1d(x3, chomp3, min_bytes_for_kernel=0, tile_bytes=8 * 128 * 4))
    assert jnp.array_equal(out3, x3[:, :, :-chomp3]), "mismatch (column-tiled path)"

    # 4) Moderate shape hitting the >= 8-step row-tiled grid with the default
    #    ~2 MiB per-block budget.
    N4, C4, L4, chomp4 = 4, 64, 512, 13
    x4 = jax.random.normal(jax.random.PRNGKey(0), (N4, C4, L4), dtype=jnp.float32)
    out4 = jax.block_until_ready(chomp1d(x4, chomp4, min_bytes_for_kernel=0))
    assert jnp.array_equal(out4, x4[:, :, :-chomp4]), "mismatch (row-tiled path)"

    # 5) Tiny-input fast path (plain XLA slice fallback).
    out5 = jax.block_until_ready(chomp1d(x, chomp))
    assert jnp.array_equal(out5, ref), "mismatch (XLA fallback path)"

    # TODO(synk): when composed inside a full TCN block, fuse the chomp into
    # the neighboring conv/ReLU kernel's BlockSpec instead of a standalone copy.
    print("KERNEL_OK")
</pallas_src>

<mosaic_0001>
module attributes {stable_mosaic.version = 11 : i64} {
  func.func @_copy_kernel(%arg0: i32, %arg1: i32, %arg2: memref<8x128xf32, #tpu.memory_space<vmem>>, %arg3: memref<8x128xf32, #tpu.memory_space<vmem>>) attributes {dimension_semantics = [#tpu.dimension_semantics<parallel>, #tpu.dimension_semantics<parallel>], iteration_bounds = array<i64: 1, 1>, scalar_prefetch = 0 : i64, scratch_operands = 0 : i64, tpu.core_type = #tpu.core_type<tc>, window_params = [{transform_indices = @transform_0, window_bounds = array<i64: 8, 128>}, {transform_indices = @transform_1, window_bounds = array<i64: 8, 128>}]} {
    %c0 = arith.constant 0 : index
    %c0_0 = arith.constant 0 : index
    %0 = vector.load %arg2[%c0, %c0_0] : memref<8x128xf32, #tpu.memory_space<vmem>>, vector<8x128xf32>
    %c0_1 = arith.constant 0 : index
    %c0_2 = arith.constant 0 : index
    %1 = vector.load %arg3[%c0_1, %c0_2] : memref<8x128xf32, #tpu.memory_space<vmem>>, vector<8x128xf32>
    tpu.vector_store %arg3[%c0_1, %c0_2], %0 {strides = array<i32>} : memref<8x128xf32, #tpu.memory_space<vmem>>, vector<8x128xf32>,
    return
  }
  func.func @transform_0(%arg0: i32, %arg1: i32) -> (i32, i32) {
    %c0_i32 = arith.constant 0 : i32
    return %arg0, %arg1 : i32, i32
  }
  func.func @transform_1(%arg0: i32, %arg1: i32) -> (i32, i32) {
    %c0_i32 = arith.constant 0 : i32
    return %arg0, %arg1 : i32, i32
  }
}

</mosaic_0001>

<llo_original>
// kernel: tpu_custom_call.1
$region0: #{tpu_custom_call.1}
  #allocation0 [shape = 'u32[]', space=smem, size = 0x4, offset = 0x4, fixed_abs, tag = 'smem constant byte address 0x4 - core index']
  #allocation1 [shape = 'u32[72,128]{1,0:T(1,128)}', space=vmem, size = 0x9000, scoped, tag = 'internal scratch']
  %s0 = inlined_call_operand.hbm [shape: f32[8,16], index: 0, kind: input, shape index: {}]
  %s1 = inlined_call_operand.hbm [shape: f32[8,14], index: 1, kind: output, shape index: {}]
  %s2 = sld [smem:[#allocation0]]
  $region18: #{tpu_custom_call.1} parent=0
    _
  %s4 = ssub.s32 1, %s2
  %s5 = scalar_select 0, %s4, %s2
  $region1: #{tpu_custom_call.1} parent=0
    #allocation2 [shape = 'u8[4096]{0}', space=vmem, size = 0x1000, scoped, tag = 'input window, operand 0, single buffered']
    #allocation3 [shape = 's32[1]{0}', space=sflag, size = 0x4, scoped, tag = 'scoped memory for tpu_custom_call.1']
    #allocation4 [shape = 's32[1]{0}', space=sflag, size = 0x4, scoped, tag = 'scoped memory for tpu_custom_call.1']
    #allocation5 [shape = 'u8[4096]{0}', space=vmem, size = 0x1000, scoped, tag = 'output window, operand 0, single buffered']
    %6 = vsyncpa [#allocation3], 0
    %7 = vsyncpa [#allocation4], 0
    // Predicated region
    $region2: #{tpu_custom_call.1} parent=1 // pred_check
      _
    $region3: #{tpu_custom_call.1} parent=1 // pred_check_branch
      %9 = sbr.rel (0) target = $region5
    $region4: #{tpu_custom_call.1} parent=1 // pred_region
      %11 = vsyncadd [#allocation3], 0
      %s13 = sshll.u32 %s0, 4
      %s14 = int_to_ptr.hbm [resolvable:$true] %s13
      %s15 = sshll.u32 [#allocation2], 4
      %s16 = int_to_ptr.vmem [resolvable:$true] %s15
      %18 = dma.hbm_to_vmem [thread:$0]  %s14, 128, %s16, [#allocation3]
    $region5: #{tpu_custom_call.1} parent=1 // pred_fallthru
      _
    // Predicated region
    $region6: #{tpu_custom_call.1} parent=1 // pred_check
      _
    $region7: #{tpu_custom_call.1} parent=1 // pred_check_branch
      %20 = sbr.rel (0) target = $region9
    $region8: #{tpu_custom_call.1} parent=1 // pred_region
      %22 = dma.done [#allocation3], 128
    $region9: #{tpu_custom_call.1} parent=1 // pred_fallthru
      _
    %v23 = vld [vmem:[#allocation2] sm:$0xff]
    %24 = vst [vmem:[#allocation5] sm:$0xff] %v23
    // Predicated region
    $region10: #{tpu_custom_call.1} parent=1 // pred_check
      _
    $region11: #{tpu_custom_call.1} parent=1 // pred_check_branch
      %26 = sbr.rel (0) target = $region13
    $region12: #{tpu_custom_call.1} parent=1 // pred_region
      %28 = vsyncadd [#allocation4], 0
      %s30 = sshll.u32 [#allocation5], 4
      %s31 = int_to_ptr.vmem [resolvable:$true] %s30
      %s32 = sshll.u32 %s1, 4
      %s33 = int_to_ptr.hbm [resolvable:$true] %s32
      %35 = dma.vmem_to_hbm [thread:$0]  %s31, 128, %s33, [#allocation4]
    $region13: #{tpu_custom_call.1} parent=1 // pred_fallthru
      _
    // Predicated region
    $region14: #{tpu_custom_call.1} parent=1 // pred_check
      _
    $region15: #{tpu_custom_call.1} parent=1 // pred_check_branch
      %37 = sbr.rel (0) target = $region17
    $region16: #{tpu_custom_call.1} parent=1 // pred_region
      %39 = dma.done [#allocation4], 128
    $region17: #{tpu_custom_call.1} parent=1 // pred_fallthru
      _
    %40 = vsyncpa [#allocation3], 1
    %41 = vsyncpa [#allocation4], 1

</llo_original>
